<compile_context>
chip_gen: v5e
topology: v5e:2x2
jax: 0.10.0
libtpu: 0.0.40
codegen_flags: <defaults>
</compile_context>

<pallas_src>
from collections import namedtuple

import numpy as np
import jax
import jax.numpy as jnp
from jax.experimental import pallas as pl
from jax.experimental.pallas import tpu as pltpu

LossTuple = namedtuple(
    "LossTuple",
    ["rpn_loc_loss", "rpn_cls_loss", "roi_loc_loss", "roi_cls_loss", "total_loss"],
)

_EPS = 1e-7           # matches the (unused) eps parameter of _smooth_l1_loss
_RPN_IGNORE = -1      # F.cross_entropy(..., ignore_index=-1)
_ROI_IGNORE = -100    # nn.CrossEntropyLoss() default ignore_index


# ----------------------------------------------------------------------------
# In-kernel helpers
# ----------------------------------------------------------------------------
def _giou_masked_mean(box, lbl):
    """GIoU loc loss == _fast_rcnn_loc_loss with the GIoU _smooth_l1_loss body.

    box: (8, N) f32 -- pred box rows 0..3, gt box rows 4..7 (coords on sublanes,
         boxes on lanes).  lbl: (1, N) i32.
    Returns (1, 1) f32 = sum(1 - GIoU over lbl>0) / max(num_pos, 1).
    """
    x1p = jnp.minimum(box[0:1], box[2:3]); x2p = jnp.maximum(box[0:1], box[2:3])
    y1p = jnp.minimum(box[1:2], box[3:4]); y2p = jnp.maximum(box[1:2], box[3:4])
    x1g = jnp.minimum(box[4:5], box[6:7]); x2g = jnp.maximum(box[4:5], box[6:7])
    y1g = jnp.minimum(box[5:6], box[7:8]); y2g = jnp.maximum(box[5:6], box[7:8])

    area_p = jnp.abs((x2p - x1p) * (y2p - y1p))
    area_g = jnp.abs((x2g - x1g) * (y2g - y1g))

    inter_h = jnp.maximum(jnp.minimum(y2p, y2g) - jnp.maximum(y1p, y1g), 0.0)
    inter_w = jnp.maximum(jnp.minimum(x2p, x2g) - jnp.maximum(x1p, x1g), 0.0)
    inter = inter_h * inter_w

    area_c = (jnp.maximum(x2p, x2g) - jnp.minimum(x1p, x1g)) * \
             (jnp.maximum(y2p, y2g) - jnp.minimum(y1p, y1g))
    union = area_p + area_g - inter

    inv_u = pl.reciprocal(union + _EPS, approx=True)   # EUP slot, not VALU
    inv_c = pl.reciprocal(area_c + _EPS, approx=True)
    giou = inter * inv_u - (area_c - union) * inv_c
    loss = 1.0 - giou                                  # (1, N)

    pos = lbl > 0
    loss_sum = jnp.sum(jnp.where(pos, loss, 0.0), keepdims=True)   # (1, 1)
    num_pos = jnp.sum(jnp.where(pos, 1.0, 0.0), keepdims=True)     # (1, 1)
    return loss_sum * pl.reciprocal(jnp.maximum(num_pos, 1.0), approx=True)


def _ce_masked_mean(logits, lbl, ignore_index):
    """Cross-entropy (log-softmax + NLL), mean over rows with lbl != ignore_index.

    logits: (C, N) f32 -- classes on sublanes, samples on lanes.  lbl: (1, N) i32.
    Returns (1, 1) f32.
    """
    m = jnp.max(logits, axis=0, keepdims=True)                               # (1, N)
    lse = m + jnp.log(jnp.sum(jnp.exp(logits - m), axis=0, keepdims=True))   # (1, N)
    cls = jax.lax.broadcasted_iota(jnp.int32, logits.shape, 0)               # (C, N)
    tgt = jnp.sum(jnp.where(cls == lbl, logits, 0.0), axis=0, keepdims=True) # (1, N)
    nll_row = lse - tgt                                                      # (1, N)

    valid = lbl != ignore_index
    nll = jnp.sum(jnp.where(valid, nll_row, 0.0), keepdims=True)             # (1, 1)
    cnt = jnp.sum(jnp.where(valid, 1.0, 0.0), keepdims=True)                 # (1, 1)
    return nll * pl.reciprocal(jnp.maximum(cnt, 1.0), approx=True)


# ----------------------------------------------------------------------------
# Fused per-image loss kernel (grid over images)
# ----------------------------------------------------------------------------
def _fused_loss_kernel(valid_ref,                       # SMEM scalar-prefetch (n,)
                       rpn_box_ref, rpn_lbl_ref, rpn_score_ref,
                       roi_box_ref, roi_lbl_ref, roi_score_ref,
                       out_ref):
    i = pl.program_id(0)

    @pl.when(valid_ref[i] != 0)
    def _compute():
        rpn_loc = _giou_masked_mean(rpn_box_ref[...], rpn_lbl_ref[...])
        rpn_cls = _ce_masked_mean(rpn_score_ref[...], rpn_lbl_ref[...], _RPN_IGNORE)
        roi_loc = _giou_masked_mean(roi_box_ref[...], roi_lbl_ref[...])
        roi_cls = _ce_masked_mean(roi_score_ref[...], roi_lbl_ref[...], _ROI_IGNORE)

        # Lane-dense (1, 8, 128) tile: loss k broadcast across sublane row k.
        sub = jax.lax.broadcasted_iota(jnp.int32, out_ref.shape, 1)
        out_ref[...] = (jnp.where(sub == 0, rpn_loc, 0.0)
                        + jnp.where(sub == 1, rpn_cls, 0.0)
                        + jnp.where(sub == 2, roi_loc, 0.0)
                        + jnp.where(sub == 3, roi_cls, 0.0))

    @pl.when(valid_ref[i] == 0)
    def _skip():
        out_ref[...] = jnp.zeros_like(out_ref)


# ----------------------------------------------------------------------------
# Jitted wrapper: packing / transposes / gather + one pallas_call
# ----------------------------------------------------------------------------
@jax.jit
def _fused_forward_losses(bboxes, get_pre_anchors,
                          rpn_locs, rpn_scores, gt_rpn_locs, gt_rpn_labels,
                          roi_cls_locs, roi_scores, gt_roi_locs, gt_roi_labels):
    n, A = rpn_locs.shape[0], rpn_locs.shape[1]
    S = gt_roi_locs.shape[1]
    n_cls = roi_scores.shape[-1]

    # On-device per-image skip mask (reference: host `continue` branches).
    anchor_ok = jnp.logical_not(
        jnp.any(get_pre_anchors == 0, axis=tuple(range(1, get_pre_anchors.ndim))))
    bbox_ok = jnp.logical_not(
        jnp.any(bboxes == 0, axis=tuple(range(1, bboxes.ndim))))
    valid = jnp.logical_and(anchor_ok, bbox_ok).astype(jnp.int32)          # (n,)

    # RPN operands: pack pred+gt boxes into one (n, 8, A); labels (n, 1, A);
    # scores transposed to (n, 2, A) so the lane axis carries the anchors.
    rpn_box = jnp.concatenate(
        [jnp.transpose(rpn_locs.astype(jnp.float32), (0, 2, 1)),
         jnp.transpose(gt_rpn_locs.astype(jnp.float32), (0, 2, 1))], axis=1)
    rpn_lbl = gt_rpn_labels.astype(jnp.int32).reshape(n, 1, A)
    rpn_score_t = jnp.transpose(rpn_scores.astype(jnp.float32), (0, 2, 1))

    # ROI operands: class-selected loc gather done inside the jitted graph.
    roi_cls_loc = roi_cls_locs.astype(jnp.float32).reshape(n, S, -1, 4)
    gt_roi_lbl = gt_roi_labels.astype(jnp.int32)
    gather_idx = jnp.broadcast_to(gt_roi_lbl[:, :, None, None], (n, S, 1, 4))
    roi_loc = jnp.take_along_axis(roi_cls_loc, gather_idx, axis=2)[:, :, 0, :]
    roi_box = jnp.concatenate(
        [jnp.transpose(roi_loc, (0, 2, 1)),
         jnp.transpose(gt_roi_locs.astype(jnp.float32), (0, 2, 1))], axis=1)
    roi_lbl = gt_roi_lbl.reshape(n, 1, S)
    roi_score_t = jnp.transpose(roi_scores.astype(jnp.float32), (0, 2, 1))

    # TODO(synk): for realistic RPN sizes (N ~ 16k-20k anchors) tile the lane
    # axis with a 1-2K-lane BlockSpec instead of loading the full (8, N) block.
    out = pl.pallas_call(
        _fused_loss_kernel,
        out_shape=jax.ShapeDtypeStruct((n, 8, 128), jnp.float32),
        grid_spec=pltpu.PrefetchScalarGridSpec(
            num_scalar_prefetch=1,
            grid=(n,),
            in_specs=[
                pl.BlockSpec((pl.Squeezed(), 8, A), lambda i, v: (i, 0, 0)),
                pl.BlockSpec((pl.Squeezed(), 1, A), lambda i, v: (i, 0, 0)),
                pl.BlockSpec((pl.Squeezed(), 2, A), lambda i, v: (i, 0, 0)),
                pl.BlockSpec((pl.Squeezed(), 8, S), lambda i, v: (i, 0, 0)),
                pl.BlockSpec((pl.Squeezed(), 1, S), lambda i, v: (i, 0, 0)),
                pl.BlockSpec((pl.Squeezed(), n_cls, S), lambda i, v: (i, 0, 0)),
            ],
            out_specs=pl.BlockSpec((1, 8, 128), lambda i, v: (i, 0, 0)),
        ),
        compiler_params=pltpu.CompilerParams(
            dimension_semantics=("parallel",)),   # v7x: images across the 2 TCs
    )(valid, rpn_box, rpn_lbl, rpn_score_t, roi_box, roi_lbl, roi_score_t)

    per_image = out[:, 0:4, 0]                       # (n, 4): rpn_loc, rpn_cls, roi_loc, roi_cls
    sums = jnp.sum(per_image, axis=0) / n            # divide by n as in the reference
    rpn_loc_loss, rpn_cls_loss = sums[0], sums[1]
    roi_loc_loss, roi_cls_loss = sums[2], sums[3]
    total = rpn_loc_loss + rpn_cls_loss + roi_loc_loss + roi_cls_loss
    return rpn_loc_loss, rpn_cls_loss, roi_loc_loss, roi_cls_loss, total


# ----------------------------------------------------------------------------
# Trainer wrapper reproducing FasterRCNNTrainer.forward loss aggregation
# ----------------------------------------------------------------------------
class FasterRCNNTrainerPallas:
    def __init__(self):
        self.rpn_sigma = 1
        self.roi_sigma = 1
        self.loc_normalize_mean = [0, 0, 0, 0]
        self.loc_normalize_std = [0.1, 0.1, 0.2, 0.2]
        # TODO(synk): faster_rcnn.extractor / .rpn / .head, AnchorTargetCreator and
        # ProposalTargetCreator are external modules with no definition in the
        # source file; their outputs are supplied as precomputed intermediates.

    def forward(self, imgs, bboxes, labels, scale, *,
                rpn_locs, rpn_scores, gt_rpn_locs, gt_rpn_labels, get_pre_anchors,
                roi_cls_locs, roi_scores, gt_roi_locs, gt_roi_labels):
        del imgs, labels, scale   # consumed by the external sub-modules/creators

        if bboxes.size == 0:      # static shape check (reference: bbox.size == 0)
            z = jnp.zeros((), jnp.float32)
            return LossTuple(z, z, z, z, z)

        (rpn_loc_loss, rpn_cls_loss,
         roi_loc_loss, roi_cls_loss, total) = _fused_forward_losses(
            bboxes, get_pre_anchors,
            rpn_locs, rpn_scores, gt_rpn_locs, gt_rpn_labels,
            roi_cls_locs, roi_scores, gt_roi_locs, gt_roi_labels)
        return LossTuple(rpn_loc_loss, rpn_cls_loss,
                         roi_loc_loss, roi_cls_loss, total)


# ----------------------------------------------------------------------------
# Main: deterministic small-shape smoke test
# ----------------------------------------------------------------------------
if __name__ == "__main__":
    key = jax.random.PRNGKey(0)
    ks = jax.random.split(key, 12)

    n, C_img, H, W = 2, 3, 32, 32        # imgs (only shape is used)
    A = 256                              # anchors per image
    S = 128                              # sampled ROIs per image
    n_class = 8
    n_gt = 5                             # ground-truth boxes per image

    imgs = jax.random.normal(ks[0], (n, C_img, H, W), jnp.float32)
    bboxes = jax.random.uniform(ks[1], (n, n_gt, 4), jnp.float32, 1.0, 30.0)
    labels = jax.random.randint(ks[2], (n, n_gt), 0, n_class - 1)
    scale = 1.0

    # Precomputed intermediates (stand-ins for extractor / rpn / head /
    # AnchorTargetCreator / ProposalTargetCreator outputs).
    rpn_locs = jax.random.uniform(ks[3], (n, A, 4), jnp.float32, 0.0, 10.0)
    rpn_scores = jax.random.normal(ks[4], (n, A, 2), jnp.float32)
    gt_rpn_locs = jax.random.uniform(ks[5], (n, A, 4), jnp.float32, 0.0, 10.0)
    gt_rpn_labels = jax.random.randint(ks[6], (n, A), -1, 2)        # {-1, 0, 1}
    get_pre_anchors = jnp.ones((n, A, 4), jnp.float32)              # all nonzero

    roi_cls_locs = jax.random.uniform(ks[7], (n, S, n_class * 4), jnp.float32, 0.0, 10.0)
    roi_scores = jax.random.normal(ks[8], (n, S, n_class), jnp.float32)
    gt_roi_locs = jax.random.uniform(ks[9], (n, S, 4), jnp.float32, 0.0, 10.0)
    gt_roi_labels = jax.random.randint(ks[10], (n, S), 0, n_class)

    trainer = FasterRCNNTrainerPallas()
    out = trainer.forward(
        imgs, bboxes, labels, scale,
        rpn_locs=rpn_locs, rpn_scores=rpn_scores,
        gt_rpn_locs=gt_rpn_locs, gt_rpn_labels=gt_rpn_labels,
        get_pre_anchors=get_pre_anchors,
        roi_cls_locs=roi_cls_locs, roi_scores=roi_scores,
        gt_roi_locs=gt_roi_locs, gt_roi_labels=gt_roi_labels,
    )
    total = jax.block_until_ready(out.total_loss)
    assert np.isfinite(np.asarray(total)), "total loss is not finite"
    print("KERNEL_OK")
</pallas_src>

<mosaic_0001>
module attributes {stable_mosaic.version = 11 : i64} {
  func.func @_fused_loss_kernel(%arg0: i32, %arg1: memref<2xi32, #tpu.memory_space<smem>>, %arg2: memref<1x8x256xf32, #tpu.memory_space<vmem>>, %arg3: memref<1x1x256xi32, #tpu.memory_space<vmem>>, %arg4: memref<1x2x256xf32, #tpu.memory_space<vmem>>, %arg5: memref<1x8x128xf32, #tpu.memory_space<vmem>>, %arg6: memref<1x1x128xi32, #tpu.memory_space<vmem>>, %arg7: memref<1x8x128xf32, #tpu.memory_space<vmem>>, %arg8: memref<1x8x128xf32, #tpu.memory_space<vmem>>) attributes {dimension_semantics = [#tpu.dimension_semantics<parallel>], iteration_bounds = array<i64: 2>, scalar_prefetch = 1 : i64, scratch_operands = 0 : i64, tpu.core_type = #tpu.core_type<tc>, window_params = [{transform_indices = @transform_0, window_bounds = array<i64: 1, 8, 256>}, {transform_indices = @transform_1, window_bounds = array<i64: 1, 1, 256>}, {transform_indices = @transform_2, window_bounds = array<i64: 1, 2, 256>}, {transform_indices = @transform_3, window_bounds = array<i64: 1, 8, 128>}, {transform_indices = @transform_4, window_bounds = array<i64: 1, 1, 128>}, {transform_indices = @transform_5, window_bounds = array<i64: 1, 8, 128>}, {transform_indices = @transform_6, window_bounds = array<i64: 1, 8, 128>}]} {
    %0 = arith.index_cast %arg0 : i32 to index
    %1 = memref.load %arg1[%0] : memref<2xi32, #tpu.memory_space<smem>>
    %c0_i32 = arith.constant 0 : i32
    %2 = arith.cmpi ne, %1, %c0_i32 : i32
    %3 = arith.extui %2 : i1 to i32
    %c0_i32_0 = arith.constant 0 : i32
    %4 = arith.cmpi ne, %3, %c0_i32_0 : i32
    scf.if %4 {
      %c0 = arith.constant 0 : index
      %c0_3 = arith.constant 0 : index
      %c0_4 = arith.constant 0 : index
      %10 = vector.load %arg2[%c0, %c0_3, %c0_4] : memref<1x8x256xf32, #tpu.memory_space<vmem>>, vector<1x8x256xf32>
      %11 = vector.shape_cast %10 : vector<1x8x256xf32> to vector<8x256xf32>
      %c0_5 = arith.constant 0 : index
      %c0_6 = arith.constant 0 : index
      %c0_7 = arith.constant 0 : index
      %12 = vector.load %arg3[%c0_5, %c0_6, %c0_7] : memref<1x1x256xi32, #tpu.memory_space<vmem>>, vector<1x1x256xi32>
      %13 = vector.shape_cast %12 : vector<1x1x256xi32> to vector<1x256xi32>
      %14 = vector.extract_strided_slice %11 {offsets = [0, 0], sizes = [1, 256], strides = [1, 1]} : vector<8x256xf32> to vector<1x256xf32>
      %15 = vector.extract_strided_slice %11 {offsets = [2, 0], sizes = [1, 256], strides = [1, 1]} : vector<8x256xf32> to vector<1x256xf32>
      %16 = arith.minimumf %14, %15 : vector<1x256xf32>
      %17 = vector.extract_strided_slice %11 {offsets = [0, 0], sizes = [1, 256], strides = [1, 1]} : vector<8x256xf32> to vector<1x256xf32>
      %18 = vector.extract_strided_slice %11 {offsets = [2, 0], sizes = [1, 256], strides = [1, 1]} : vector<8x256xf32> to vector<1x256xf32>
      %19 = arith.maximumf %17, %18 : vector<1x256xf32>
      %20 = vector.extract_strided_slice %11 {offsets = [1, 0], sizes = [1, 256], strides = [1, 1]} : vector<8x256xf32> to vector<1x256xf32>
      %21 = vector.extract_strided_slice %11 {offsets = [3, 0], sizes = [1, 256], strides = [1, 1]} : vector<8x256xf32> to vector<1x256xf32>
      %22 = arith.minimumf %20, %21 : vector<1x256xf32>
      %23 = vector.extract_strided_slice %11 {offsets = [1, 0], sizes = [1, 256], strides = [1, 1]} : vector<8x256xf32> to vector<1x256xf32>
      %24 = vector.extract_strided_slice %11 {offsets = [3, 0], sizes = [1, 256], strides = [1, 1]} : vector<8x256xf32> to vector<1x256xf32>
      %25 = arith.maximumf %23, %24 : vector<1x256xf32>
      %26 = vector.extract_strided_slice %11 {offsets = [4, 0], sizes = [1, 256], strides = [1, 1]} : vector<8x256xf32> to vector<1x256xf32>
      %27 = vector.extract_strided_slice %11 {offsets = [6, 0], sizes = [1, 256], strides = [1, 1]} : vector<8x256xf32> to vector<1x256xf32>
      %28 = arith.minimumf %26, %27 : vector<1x256xf32>
      %29 = vector.extract_strided_slice %11 {offsets = [4, 0], sizes = [1, 256], strides = [1, 1]} : vector<8x256xf32> to vector<1x256xf32>
      %30 = vector.extract_strided_slice %11 {offsets = [6, 0], sizes = [1, 256], strides = [1, 1]} : vector<8x256xf32> to vector<1x256xf32>
      %31 = arith.maximumf %29, %30 : vector<1x256xf32>
      %32 = vector.extract_strided_slice %11 {offsets = [5, 0], sizes = [1, 256], strides = [1, 1]} : vector<8x256xf32> to vector<1x256xf32>
      %33 = vector.extract_strided_slice %11 {offsets = [7, 0], sizes = [1, 256], strides = [1, 1]} : vector<8x256xf32> to vector<1x256xf32>
      %34 = arith.minimumf %32, %33 : vector<1x256xf32>
      %35 = vector.extract_strided_slice %11 {offsets = [5, 0], sizes = [1, 256], strides = [1, 1]} : vector<8x256xf32> to vector<1x256xf32>
      %36 = vector.extract_strided_slice %11 {offsets = [7, 0], sizes = [1, 256], strides = [1, 1]} : vector<8x256xf32> to vector<1x256xf32>
      %37 = arith.maximumf %35, %36 : vector<1x256xf32>
      %38 = arith.subf %19, %16 : vector<1x256xf32>
      %39 = arith.subf %25, %22 : vector<1x256xf32>
      %40 = arith.mulf %38, %39 : vector<1x256xf32>
      %41 = math.absf %40 : vector<1x256xf32>
      %42 = arith.subf %31, %28 : vector<1x256xf32>
      %43 = arith.subf %37, %34 : vector<1x256xf32>
      %44 = arith.mulf %42, %43 : vector<1x256xf32>
      %45 = math.absf %44 : vector<1x256xf32>
      %46 = arith.minimumf %25, %37 : vector<1x256xf32>
      %47 = arith.maximumf %22, %34 : vector<1x256xf32>
      %48 = arith.subf %46, %47 : vector<1x256xf32>
      %cst = arith.constant 0.000000e+00 : f32
      %49 = vector.broadcast %cst : f32 to vector<1x256xf32>
      %50 = arith.maximumf %48, %49 : vector<1x256xf32>
      %51 = arith.minimumf %19, %31 : vector<1x256xf32>
      %52 = arith.maximumf %16, %28 : vector<1x256xf32>
      %53 = arith.subf %51, %52 : vector<1x256xf32>
      %cst_8 = arith.constant 0.000000e+00 : f32
      %54 = vector.broadcast %cst_8 : f32 to vector<1x256xf32>
      %55 = arith.maximumf %53, %54 : vector<1x256xf32>
      %56 = arith.mulf %50, %55 : vector<1x256xf32>
      %57 = arith.maximumf %19, %31 : vector<1x256xf32>
      %58 = arith.minimumf %16, %28 : vector<1x256xf32>
      %59 = arith.subf %57, %58 : vector<1x256xf32>
      %60 = arith.maximumf %25, %37 : vector<1x256xf32>
      %61 = arith.minimumf %22, %34 : vector<1x256xf32>
      %62 = arith.subf %60, %61 : vector<1x256xf32>
      %63 = arith.mulf %59, %62 : vector<1x256xf32>
      %64 = arith.addf %41, %45 : vector<1x256xf32>
      %65 = arith.subf %64, %56 : vector<1x256xf32>
      %cst_9 = arith.constant 1.000000e-07 : f32
      %66 = vector.broadcast %cst_9 : f32 to vector<1x256xf32>
      %67 = arith.addf %65, %66 : vector<1x256xf32>
      %68 = tpu.reciprocal %67 {approx = true} : vector<1x256xf32> -> vector<1x256xf32>
      %cst_10 = arith.constant 1.000000e-07 : f32
      %69 = vector.broadcast %cst_10 : f32 to vector<1x256xf32>
      %70 = arith.addf %63, %69 : vector<1x256xf32>
      %71 = tpu.reciprocal %70 {approx = true} : vector<1x256xf32> -> vector<1x256xf32>
      %72 = arith.mulf %56, %68 : vector<1x256xf32>
      %73 = arith.subf %63, %65 : vector<1x256xf32>
      %74 = arith.mulf %73, %71 : vector<1x256xf32>
      %75 = arith.subf %72, %74 : vector<1x256xf32>
      %cst_11 = arith.constant 1.000000e+00 : f32
      %76 = vector.broadcast %cst_11 : f32 to vector<1x256xf32>
      %77 = arith.subf %76, %75 : vector<1x256xf32>
      %c0_i32_12 = arith.constant 0 : i32
      %78 = vector.broadcast %c0_i32_12 : i32 to vector<1x256xi32>
      %79 = arith.cmpi sgt, %13, %78 : vector<1x256xi32>
      %cst_13 = arith.constant 0.000000e+00 : f32
      %80 = vector.broadcast %cst_13 : f32 to vector<1x256xf32>
      %81 = arith.select %79, %77, %80 : vector<1x256xi1>, vector<1x256xf32>
      %82 = vector.shape_cast %81 : vector<1x256xf32> to vector<1x1x256xf32>
      %cst_14 = arith.constant dense<0.000000e+00> : vector<1xf32>
      %83 = vector.multi_reduction <add>, %82, %cst_14 [1, 2] : vector<1x1x256xf32> to vector<1xf32>
      %84 = vector.shape_cast %83 : vector<1xf32> to vector<1x1x1xf32>
      %85 = vector.extract %84[0, 0, 0] : f32 from vector<1x1x1xf32>
      %86 = vector.broadcast %85 : f32 to vector<1x1xf32>
      %cst_15 = arith.constant 1.000000e+00 : f32
      %cst_16 = arith.constant 0.000000e+00 : f32
      %87 = vector.broadcast %cst_15 : f32 to vector<1x256xf32>
      %88 = vector.broadcast %cst_16 : f32 to vector<1x256xf32>
      %89 = arith.select %79, %87, %88 : vector<1x256xi1>, vector<1x256xf32>
      %90 = vector.shape_cast %89 : vector<1x256xf32> to vector<1x1x256xf32>
      %cst_17 = arith.constant dense<0.000000e+00> : vector<1xf32>
      %91 = vector.multi_reduction <add>, %90, %cst_17 [1, 2] : vector<1x1x256xf32> to vector<1xf32>
      %92 = vector.shape_cast %91 : vector<1xf32> to vector<1x1x1xf32>
      %93 = vector.extract %92[0, 0, 0] : f32 from vector<1x1x1xf32>
      %94 = vector.broadcast %93 : f32 to vector<1x1xf32>
      %cst_18 = arith.constant 1.000000e+00 : f32
      %95 = vector.broadcast %cst_18 : f32 to vector<1x1xf32>
      %96 = arith.maximumf %94, %95 : vector<1x1xf32>
      %97 = tpu.reciprocal %96 {approx = true} : vector<1x1xf32> -> vector<1x1xf32>
      %98 = arith.mulf %86, %97 : vector<1x1xf32>
      %c0_19 = arith.constant 0 : index
      %c0_20 = arith.constant 0 : index
      %c0_21 = arith.constant 0 : index
      %99 = vector.load %arg4[%c0_19, %c0_20, %c0_21] : memref<1x2x256xf32, #tpu.memory_space<vmem>>, vector<1x2x256xf32>
      %100 = vector.shape_cast %99 : vector<1x2x256xf32> to vector<2x256xf32>
      %c0_22 = arith.constant 0 : index
      %c0_23 = arith.constant 0 : index
      %c0_24 = arith.constant 0 : index
      %101 = vector.load %arg3[%c0_22, %c0_23, %c0_24] : memref<1x1x256xi32, #tpu.memory_space<vmem>>, vector<1x1x256xi32>
      %102 = vector.shape_cast %101 : vector<1x1x256xi32> to vector<1x256xi32>
      %cst_25 = arith.constant dense<0xFF800000> : vector<256xf32>
      %103 = vector.multi_reduction <maximumf>, %100, %cst_25 [0] : vector<2x256xf32> to vector<256xf32>
      %104 = vector.shape_cast %103 : vector<256xf32> to vector<1x256xf32>
      %105 = vector.broadcast %104 : vector<1x256xf32> to vector<2x256xf32>
      %106 = arith.subf %100, %105 : vector<2x256xf32>
      %107 = math.exp %106 : vector<2x256xf32>
      %cst_26 = arith.constant dense<0.000000e+00> : vector<256xf32>
      %108 = vector.multi_reduction <add>, %107, %cst_26 [0] : vector<2x256xf32> to vector<256xf32>
      %109 = vector.shape_cast %108 : vector<256xf32> to vector<1x256xf32>
      %110 = math.log %109 : vector<1x256xf32>
      %111 = arith.addf %104, %110 : vector<1x256xf32>
      %112 = tpu.iota {dimensions = array<i32: 0>} : vector<2x256xi32>
      %113 = vector.broadcast %102 : vector<1x256xi32> to vector<2x256xi32>
      %114 = arith.cmpi eq, %112, %113 : vector<2x256xi32>
      %cst_27 = arith.constant 0.000000e+00 : f32
      %115 = vector.broadcast %cst_27 : f32 to vector<2x256xf32>
      %116 = arith.select %114, %100, %115 : vector<2x256xi1>, vector<2x256xf32>
      %cst_28 = arith.constant dense<0.000000e+00> : vector<256xf32>
      %117 = vector.multi_reduction <add>, %116, %cst_28 [0] : vector<2x256xf32> to vector<256xf32>
      %118 = vector.shape_cast %117 : vector<256xf32> to vector<1x256xf32>
      %119 = arith.subf %111, %118 : vector<1x256xf32>
      %c-1_i32 = arith.constant -1 : i32
      %120 = vector.broadcast %c-1_i32 : i32 to vector<1x256xi32>
      %121 = arith.cmpi ne, %102, %120 : vector<1x256xi32>
      %cst_29 = arith.constant 0.000000e+00 : f32
      %122 = vector.broadcast %cst_29 : f32 to vector<1x256xf32>
      %123 = arith.select %121, %119, %122 : vector<1x256xi1>, vector<1x256xf32>
      %124 = vector.shape_cast %123 : vector<1x256xf32> to vector<1x1x256xf32>
      %cst_30 = arith.constant dense<0.000000e+00> : vector<1xf32>
      %125 = vector.multi_reduction <add>, %124, %cst_30 [1, 2] : vector<1x1x256xf32> to vector<1xf32>
      %126 = vector.shape_cast %125 : vector<1xf32> to vector<1x1x1xf32>
      %127 = vector.extract %126[0, 0, 0] : f32 from vector<1x1x1xf32>
      %128 = vector.broadcast %127 : f32 to vector<1x1xf32>
      %cst_31 = arith.constant 1.000000e+00 : f32
      %cst_32 = arith.constant 0.000000e+00 : f32
      %129 = vector.broadcast %cst_31 : f32 to vector<1x256xf32>
      %130 = vector.broadcast %cst_32 : f32 to vector<1x256xf32>
      %131 = arith.select %121, %129, %130 : vector<1x256xi1>, vector<1x256xf32>
      %132 = vector.shape_cast %131 : vector<1x256xf32> to vector<1x1x256xf32>
      %cst_33 = arith.constant dense<0.000000e+00> : vector<1xf32>
      %133 = vector.multi_reduction <add>, %132, %cst_33 [1, 2] : vector<1x1x256xf32> to vector<1xf32>
      %134 = vector.shape_cast %133 : vector<1xf32> to vector<1x1x1xf32>
      %135 = vector.extract %134[0, 0, 0] : f32 from vector<1x1x1xf32>
      %136 = vector.broadcast %135 : f32 to vector<1x1xf32>
      %cst_34 = arith.constant 1.000000e+00 : f32
      %137 = vector.broadcast %cst_34 : f32 to vector<1x1xf32>
      %138 = arith.maximumf %136, %137 : vector<1x1xf32>
      %139 = tpu.reciprocal %138 {approx = true} : vector<1x1xf32> -> vector<1x1xf32>
      %140 = arith.mulf %128, %139 : vector<1x1xf32>
      %c0_35 = arith.constant 0 : index
      %c0_36 = arith.constant 0 : index
      %c0_37 = arith.constant 0 : index
      %141 = vector.load %arg5[%c0_35, %c0_36, %c0_37] : memref<1x8x128xf32, #tpu.memory_space<vmem>>, vector<1x8x128xf32>
      %142 = vector.shape_cast %141 : vector<1x8x128xf32> to vector<8x128xf32>
      %c0_38 = arith.constant 0 : index
      %c0_39 = arith.constant 0 : index
      %c0_40 = arith.constant 0 : index
      %143 = vector.load %arg6[%c0_38, %c0_39, %c0_40] : memref<1x1x128xi32, #tpu.memory_space<vmem>>, vector<1x1x128xi32>
      %144 = vector.shape_cast %143 : vector<1x1x128xi32> to vector<1x128xi32>
      %145 = vector.extract_strided_slice %142 {offsets = [0, 0], sizes = [1, 128], strides = [1, 1]} : vector<8x128xf32> to vector<1x128xf32>
      %146 = vector.extract_strided_slice %142 {offsets = [2, 0], sizes = [1, 128], strides = [1, 1]} : vector<8x128xf32> to vector<1x128xf32>
      %147 = arith.minimumf %145, %146 : vector<1x128xf32>
      %148 = vector.extract_strided_slice %142 {offsets = [0, 0], sizes = [1, 128], strides = [1, 1]} : vector<8x128xf32> to vector<1x128xf32>
      %149 = vector.extract_strided_slice %142 {offsets = [2, 0], sizes = [1, 128], strides = [1, 1]} : vector<8x128xf32> to vector<1x128xf32>
      %150 = arith.maximumf %148, %149 : vector<1x128xf32>
      %151 = vector.extract_strided_slice %142 {offsets = [1, 0], sizes = [1, 128], strides = [1, 1]} : vector<8x128xf32> to vector<1x128xf32>
      %152 = vector.extract_strided_slice %142 {offsets = [3, 0], sizes = [1, 128], strides = [1, 1]} : vector<8x128xf32> to vector<1x128xf32>
      %153 = arith.minimumf %151, %152 : vector<1x128xf32>
      %154 = vector.extract_strided_slice %142 {offsets = [1, 0], sizes = [1, 128], strides = [1, 1]} : vector<8x128xf32> to vector<1x128xf32>
      %155 = vector.extract_strided_slice %142 {offsets = [3, 0], sizes = [1, 128], strides = [1, 1]} : vector<8x128xf32> to vector<1x128xf32>
      %156 = arith.maximumf %154, %155 : vector<1x128xf32>
      %157 = vector.extract_strided_slice %142 {offsets = [4, 0], sizes = [1, 128], strides = [1, 1]} : vector<8x128xf32> to vector<1x128xf32>
      %158 = vector.extract_strided_slice %142 {offsets = [6, 0], sizes = [1, 128], strides = [1, 1]} : vector<8x128xf32> to vector<1x128xf32>
      %159 = arith.minimumf %157, %158 : vector<1x128xf32>
      %160 = vector.extract_strided_slice %142 {offsets = [4, 0], sizes = [1, 128], strides = [1, 1]} : vector<8x128xf32> to vector<1x128xf32>
      %161 = vector.extract_strided_slice %142 {offsets = [6, 0], sizes = [1, 128], strides = [1, 1]} : vector<8x128xf32> to vector<1x128xf32>
      %162 = arith.maximumf %160, %161 : vector<1x128xf32>
      %163 = vector.extract_strided_slice %142 {offsets = [5, 0], sizes = [1, 128], strides = [1, 1]} : vector<8x128xf32> to vector<1x128xf32>
      %164 = vector.extract_strided_slice %142 {offsets = [7, 0], sizes = [1, 128], strides = [1, 1]} : vector<8x128xf32> to vector<1x128xf32>
      %165 = arith.minimumf %163, %164 : vector<1x128xf32>
      %166 = vector.extract_strided_slice %142 {offsets = [5, 0], sizes = [1, 128], strides = [1, 1]} : vector<8x128xf32> to vector<1x128xf32>
      %167 = vector.extract_strided_slice %142 {offsets = [7, 0], sizes = [1, 128], strides = [1, 1]} : vector<8x128xf32> to vector<1x128xf32>
      %168 = arith.maximumf %166, %167 : vector<1x128xf32>
      %169 = arith.subf %150, %147 : vector<1x128xf32>
      %170 = arith.subf %156, %153 : vector<1x128xf32>
      %171 = arith.mulf %169, %170 : vector<1x128xf32>
      %172 = math.absf %171 : vector<1x128xf32>
      %173 = arith.subf %162, %159 : vector<1x128xf32>
      %174 = arith.subf %168, %165 : vector<1x128xf32>
      %175 = arith.mulf %173, %174 : vector<1x128xf32>
      %176 = math.absf %175 : vector<1x128xf32>
      %177 = arith.minimumf %156, %168 : vector<1x128xf32>
      %178 = arith.maximumf %153, %165 : vector<1x128xf32>
      %179 = arith.subf %177, %178 : vector<1x128xf32>
      %cst_41 = arith.constant 0.000000e+00 : f32
      %180 = vector.broadcast %cst_41 : f32 to vector<1x128xf32>
      %181 = arith.maximumf %179, %180 : vector<1x128xf32>
      %182 = arith.minimumf %150, %162 : vector<1x128xf32>
      %183 = arith.maximumf %147, %159 : vector<1x128xf32>
      %184 = arith.subf %182, %183 : vector<1x128xf32>
      %cst_42 = arith.constant 0.000000e+00 : f32
      %185 = vector.broadcast %cst_42 : f32 to vector<1x128xf32>
      %186 = arith.maximumf %184, %185 : vector<1x128xf32>
      %187 = arith.mulf %181, %186 : vector<1x128xf32>
      %188 = arith.maximumf %150, %162 : vector<1x128xf32>
      %189 = arith.minimumf %147, %159 : vector<1x128xf32>
      %190 = arith.subf %188, %189 : vector<1x128xf32>
      %191 = arith.maximumf %156, %168 : vector<1x128xf32>
      %192 = arith.minimumf %153, %165 : vector<1x128xf32>
      %193 = arith.subf %191, %192 : vector<1x128xf32>
      %194 = arith.mulf %190, %193 : vector<1x128xf32>
      %195 = arith.addf %172, %176 : vector<1x128xf32>
      %196 = arith.subf %195, %187 : vector<1x128xf32>
      %cst_43 = arith.constant 1.000000e-07 : f32
      %197 = vector.broadcast %cst_43 : f32 to vector<1x128xf32>
      %198 = arith.addf %196, %197 : vector<1x128xf32>
      %199 = tpu.reciprocal %198 {approx = true} : vector<1x128xf32> -> vector<1x128xf32>
      %cst_44 = arith.constant 1.000000e-07 : f32
      %200 = vector.broadcast %cst_44 : f32 to vector<1x128xf32>
      %201 = arith.addf %194, %200 : vector<1x128xf32>
      %202 = tpu.reciprocal %201 {approx = true} : vector<1x128xf32> -> vector<1x128xf32>
      %203 = arith.mulf %187, %199 : vector<1x128xf32>
      %204 = arith.subf %194, %196 : vector<1x128xf32>
      %205 = arith.mulf %204, %202 : vector<1x128xf32>
      %206 = arith.subf %203, %205 : vector<1x128xf32>
      %cst_45 = arith.constant 1.000000e+00 : f32
      %207 = vector.broadcast %cst_45 : f32 to vector<1x128xf32>
      %208 = arith.subf %207, %206 : vector<1x128xf32>
      %c0_i32_46 = arith.constant 0 : i32
      %209 = vector.broadcast %c0_i32_46 : i32 to vector<1x128xi32>
      %210 = arith.cmpi sgt, %144, %209 : vector<1x128xi32>
      %cst_47 = arith.constant 0.000000e+00 : f32
      %211 = vector.broadcast %cst_47 : f32 to vector<1x128xf32>
      %212 = arith.select %210, %208, %211 : vector<1x128xi1>, vector<1x128xf32>
      %213 = vector.shape_cast %212 : vector<1x128xf32> to vector<1x1x128xf32>
      %cst_48 = arith.constant dense<0.000000e+00> : vector<1xf32>
      %214 = vector.multi_reduction <add>, %213, %cst_48 [1, 2] : vector<1x1x128xf32> to vector<1xf32>
      %215 = vector.shape_cast %214 : vector<1xf32> to vector<1x1x1xf32>
      %216 = vector.extract %215[0, 0, 0] : f32 from vector<1x1x1xf32>
      %217 = vector.broadcast %216 : f32 to vector<1x1xf32>
      %cst_49 = arith.constant 1.000000e+00 : f32
      %cst_50 = arith.constant 0.000000e+00 : f32
      %218 = vector.broadcast %cst_49 : f32 to vector<1x128xf32>
      %219 = vector.broadcast %cst_50 : f32 to vector<1x128xf32>
      %220 = arith.select %210, %218, %219 : vector<1x128xi1>, vector<1x128xf32>
      %221 = vector.shape_cast %220 : vector<1x128xf32> to vector<1x1x128xf32>
      %cst_51 = arith.constant dense<0.000000e+00> : vector<1xf32>
      %222 = vector.multi_reduction <add>, %221, %cst_51 [1, 2] : vector<1x1x128xf32> to vector<1xf32>
      %223 = vector.shape_cast %222 : vector<1xf32> to vector<1x1x1xf32>
      %224 = vector.extract %223[0, 0, 0] : f32 from vector<1x1x1xf32>
      %225 = vector.broadcast %224 : f32 to vector<1x1xf32>
      %cst_52 = arith.constant 1.000000e+00 : f32
      %226 = vector.broadcast %cst_52 : f32 to vector<1x1xf32>
      %227 = arith.maximumf %225, %226 : vector<1x1xf32>
      %228 = tpu.reciprocal %227 {approx = true} : vector<1x1xf32> -> vector<1x1xf32>
      %229 = arith.mulf %217, %228 : vector<1x1xf32>
      %c0_53 = arith.constant 0 : index
      %c0_54 = arith.constant 0 : index
      %c0_55 = arith.constant 0 : index
      %230 = vector.load %arg7[%c0_53, %c0_54, %c0_55] : memref<1x8x128xf32, #tpu.memory_space<vmem>>, vector<1x8x128xf32>
      %231 = vector.shape_cast %230 : vector<1x8x128xf32> to vector<8x128xf32>
      %c0_56 = arith.constant 0 : index
      %c0_57 = arith.constant 0 : index
      %c0_58 = arith.constant 0 : index
      %232 = vector.load %arg6[%c0_56, %c0_57, %c0_58] : memref<1x1x128xi32, #tpu.memory_space<vmem>>, vector<1x1x128xi32>
      %233 = vector.shape_cast %232 : vector<1x1x128xi32> to vector<1x128xi32>
      %cst_59 = arith.constant dense<0xFF800000> : vector<128xf32>
      %234 = vector.multi_reduction <maximumf>, %231, %cst_59 [0] : vector<8x128xf32> to vector<128xf32>
      %235 = vector.shape_cast %234 : vector<128xf32> to vector<1x128xf32>
      %236 = vector.broadcast %235 : vector<1x128xf32> to vector<8x128xf32>
      %237 = arith.subf %231, %236 : vector<8x128xf32>
      %238 = math.exp %237 : vector<8x128xf32>
      %cst_60 = arith.constant dense<0.000000e+00> : vector<128xf32>
      %239 = vector.multi_reduction <add>, %238, %cst_60 [0] : vector<8x128xf32> to vector<128xf32>
      %240 = vector.shape_cast %239 : vector<128xf32> to vector<1x128xf32>
      %241 = math.log %240 : vector<1x128xf32>
      %242 = arith.addf %235, %241 : vector<1x128xf32>
      %243 = tpu.iota {dimensions = array<i32: 0>} : vector<8x128xi32>
      %244 = vector.broadcast %233 : vector<1x128xi32> to vector<8x128xi32>
      %245 = arith.cmpi eq, %243, %244 : vector<8x128xi32>
      %cst_61 = arith.constant 0.000000e+00 : f32
      %246 = vector.broadcast %cst_61 : f32 to vector<8x128xf32>
      %247 = arith.select %245, %231, %246 : vector<8x128xi1>, vector<8x128xf32>
      %cst_62 = arith.constant dense<0.000000e+00> : vector<128xf32>
      %248 = vector.multi_reduction <add>, %247, %cst_62 [0] : vector<8x128xf32> to vector<128xf32>
      %249 = vector.shape_cast %248 : vector<128xf32> to vector<1x128xf32>
      %250 = arith.subf %242, %249 : vector<1x128xf32>
      %c-100_i32 = arith.constant -100 : i32
      %251 = vector.broadcast %c-100_i32 : i32 to vector<1x128xi32>
      %252 = arith.cmpi ne, %233, %251 : vector<1x128xi32>
      %cst_63 = arith.constant 0.000000e+00 : f32
      %253 = vector.broadcast %cst_63 : f32 to vector<1x128xf32>
      %254 = arith.select %252, %250, %253 : vector<1x128xi1>, vector<1x128xf32>
      %255 = vector.shape_cast %254 : vector<1x128xf32> to vector<1x1x128xf32>
      %cst_64 = arith.constant dense<0.000000e+00> : vector<1xf32>
      %256 = vector.multi_reduction <add>, %255, %cst_64 [1, 2] : vector<1x1x128xf32> to vector<1xf32>
      %257 = vector.shape_cast %256 : vector<1xf32> to vector<1x1x1xf32>
      %258 = vector.extract %257[0, 0, 0] : f32 from vector<1x1x1xf32>
      %259 = vector.broadcast %258 : f32 to vector<1x1xf32>
      %cst_65 = arith.constant 1.000000e+00 : f32
      %cst_66 = arith.constant 0.000000e+00 : f32
      %260 = vector.broadcast %cst_65 : f32 to vector<1x128xf32>
      %261 = vector.broadcast %cst_66 : f32 to vector<1x128xf32>
      %262 = arith.select %252, %260, %261 : vector<1x128xi1>, vector<1x128xf32>
      %263 = vector.shape_cast %262 : vector<1x128xf32> to vector<1x1x128xf32>
      %cst_67 = arith.constant dense<0.000000e+00> : vector<1xf32>
      %264 = vector.multi_reduction <add>, %263, %cst_67 [1, 2] : vector<1x1x128xf32> to vector<1xf32>
      %265 = vector.shape_cast %264 : vector<1xf32> to vector<1x1x1xf32>
      %266 = vector.extract %265[0, 0, 0] : f32 from vector<1x1x1xf32>
      %267 = vector.broadcast %266 : f32 to vector<1x1xf32>
      %cst_68 = arith.constant 1.000000e+00 : f32
      %268 = vector.broadcast %cst_68 : f32 to vector<1x1xf32>
      %269 = arith.maximumf %267, %268 : vector<1x1xf32>
      %270 = tpu.reciprocal %269 {approx = true} : vector<1x1xf32> -> vector<1x1xf32>
      %271 = arith.mulf %259, %270 : vector<1x1xf32>
      %272 = tpu.iota {dimensions = array<i32: 1>} : vector<1x8x128xi32>
      %c0_i32_69 = arith.constant 0 : i32
      %273 = vector.broadcast %c0_i32_69 : i32 to vector<1x8x128xi32>
      %274 = arith.cmpi eq, %272, %273 : vector<1x8x128xi32>
      %cst_70 = arith.constant 0.000000e+00 : f32
      %275 = vector.shape_cast %98 : vector<1x1xf32> to vector<1x1x1xf32>
      %276 = vector.broadcast %275 : vector<1x1x1xf32> to vector<1x8x128xf32>
      %277 = vector.broadcast %cst_70 : f32 to vector<1x8x128xf32>
      %278 = arith.select %274, %276, %277 : vector<1x8x128xi1>, vector<1x8x128xf32>
      %c1_i32 = arith.constant 1 : i32
      %279 = vector.broadcast %c1_i32 : i32 to vector<1x8x128xi32>
      %280 = arith.cmpi eq, %272, %279 : vector<1x8x128xi32>
      %cst_71 = arith.constant 0.000000e+00 : f32
      %281 = vector.shape_cast %140 : vector<1x1xf32> to vector<1x1x1xf32>
      %282 = vector.broadcast %281 : vector<1x1x1xf32> to vector<1x8x128xf32>
      %283 = vector.broadcast %cst_71 : f32 to vector<1x8x128xf32>
      %284 = arith.select %280, %282, %283 : vector<1x8x128xi1>, vector<1x8x128xf32>
      %285 = arith.addf %278, %284 : vector<1x8x128xf32>
      %c2_i32 = arith.constant 2 : i32
      %286 = vector.broadcast %c2_i32 : i32 to vector<1x8x128xi32>
      %287 = arith.cmpi eq, %272, %286 : vector<1x8x128xi32>
      %cst_72 = arith.constant 0.000000e+00 : f32
      %288 = vector.shape_cast %229 : vector<1x1xf32> to vector<1x1x1xf32>
      %289 = vector.broadcast %288 : vector<1x1x1xf32> to vector<1x8x128xf32>
      %290 = vector.broadcast %cst_72 : f32 to vector<1x8x128xf32>
      %291 = arith.select %287, %289, %290 : vector<1x8x128xi1>, vector<1x8x128xf32>
      %292 = arith.addf %285, %291 : vector<1x8x128xf32>
      %c3_i32 = arith.constant 3 : i32
      %293 = vector.broadcast %c3_i32 : i32 to vector<1x8x128xi32>
      %294 = arith.cmpi eq, %272, %293 : vector<1x8x128xi32>
      %cst_73 = arith.constant 0.000000e+00 : f32
      %295 = vector.shape_cast %271 : vector<1x1xf32> to vector<1x1x1xf32>
      %296 = vector.broadcast %295 : vector<1x1x1xf32> to vector<1x8x128xf32>
      %297 = vector.broadcast %cst_73 : f32 to vector<1x8x128xf32>
      %298 = arith.select %294, %296, %297 : vector<1x8x128xi1>, vector<1x8x128xf32>
      %299 = arith.addf %292, %298 : vector<1x8x128xf32>
      %c0_74 = arith.constant 0 : index
      %c0_75 = arith.constant 0 : index
      %c0_76 = arith.constant 0 : index
      %300 = vector.load %arg8[%c0_74, %c0_75, %c0_76] : memref<1x8x128xf32, #tpu.memory_space<vmem>>, vector<1x8x128xf32>
      tpu.vector_store %arg8[%c0_74, %c0_75, %c0_76], %299 {strides = array<i32>} : memref<1x8x128xf32, #tpu.memory_space<vmem>>, vector<1x8x128xf32>,
    } else {
    }
    %5 = arith.index_cast %arg0 : i32 to index
    %6 = memref.load %arg1[%5] : memref<2xi32, #tpu.memory_space<smem>>
    %c0_i32_1 = arith.constant 0 : i32
    %7 = arith.cmpi eq, %6, %c0_i32_1 : i32
    %8 = arith.extui %7 : i1 to i32
    %c0_i32_2 = arith.constant 0 : i32
    %9 = arith.cmpi ne, %8, %c0_i32_2 : i32
    scf.if %9 {
      %cst = arith.constant 0.000000e+00 : f32
      %10 = vector.broadcast %cst : f32 to vector<1x8x128xf32>
      %c0 = arith.constant 0 : index
      %c0_3 = arith.constant 0 : index
      %c0_4 = arith.constant 0 : index
      %11 = vector.load %arg8[%c0, %c0_3, %c0_4] : memref<1x8x128xf32, #tpu.memory_space<vmem>>, vector<1x8x128xf32>
      tpu.vector_store %arg8[%c0, %c0_3, %c0_4], %10 {strides = array<i32>} : memref<1x8x128xf32, #tpu.memory_space<vmem>>, vector<1x8x128xf32>,
    } else {
    }
    return
  }
  func.func @transform_0(%arg0: i32, %arg1: memref<2xi32, #tpu.memory_space<smem>>) -> (i32, i32, i32) {
    %c0_i32 = arith.constant 0 : i32
    %c0_i32_0 = arith.constant 0 : i32
    %c0_i32_1 = arith.constant 0 : i32
    return %arg0, %c0_i32, %c0_i32_0 : i32, i32, i32
  }
  func.func @transform_1(%arg0: i32, %arg1: memref<2xi32, #tpu.memory_space<smem>>) -> (i32, i32, i32) {
    %c0_i32 = arith.constant 0 : i32
    %c0_i32_0 = arith.constant 0 : i32
    %c0_i32_1 = arith.constant 0 : i32
    return %arg0, %c0_i32, %c0_i32_0 : i32, i32, i32
  }
  func.func @transform_2(%arg0: i32, %arg1: memref<2xi32, #tpu.memory_space<smem>>) -> (i32, i32, i32) {
    %c0_i32 = arith.constant 0 : i32
    %c0_i32_0 = arith.constant 0 : i32
    %c0_i32_1 = arith.constant 0 : i32
    return %arg0, %c0_i32, %c0_i32_0 : i32, i32, i32
  }
  func.func @transform_3(%arg0: i32, %arg1: memref<2xi32, #tpu.memory_space<smem>>) -> (i32, i32, i32) {
    %c0_i32 = arith.constant 0 : i32
    %c0_i32_0 = arith.constant 0 : i32
    %c0_i32_1 = arith.constant 0 : i32
    return %arg0, %c0_i32, %c0_i32_0 : i32, i32, i32
  }
  func.func @transform_4(%arg0: i32, %arg1: memref<2xi32, #tpu.memory_space<smem>>) -> (i32, i32, i32) {
    %c0_i32 = arith.constant 0 : i32
    %c0_i32_0 = arith.constant 0 : i32
    %c0_i32_1 = arith.constant 0 : i32
    return %arg0, %c0_i32, %c0_i32_0 : i32, i32, i32
  }
  func.func @transform_5(%arg0: i32, %arg1: memref<2xi32, #tpu.memory_space<smem>>) -> (i32, i32, i32) {
    %c0_i32 = arith.constant 0 : i32
    %c0_i32_0 = arith.constant 0 : i32
    %c0_i32_1 = arith.constant 0 : i32
    return %arg0, %c0_i32, %c0_i32_0 : i32, i32, i32
  }
  func.func @transform_6(%arg0: i32, %arg1: memref<2xi32, #tpu.memory_space<smem>>) -> (i32, i32, i32) {
    %c0_i32 = arith.constant 0 : i32
    %c0_i32_0 = arith.constant 0 : i32
    %c0_i32_1 = arith.constant 0 : i32
    return %arg0, %c0_i32, %c0_i32_0 : i32, i32, i32
  }
}

</mosaic_0001>

<llo_original>
// kernel: _fused_forward_losses.1
$region0: #{_fused_forward_losses.1}
  #allocation0 [shape = 'u32[]', space=smem, size = 0x4, offset = 0x4, fixed_abs, tag = 'smem constant byte address 0x4 - core index']
  #allocation1 [shape = 'u32[72,128]{1,0:T(1,128)}', space=vmem, size = 0x9000, scoped, tag = 'internal scratch']
  #allocation2 [shape = 's32[1]{0}', space=sflag, size = 0x4, scoped, tag = 'scoped memory for _fused_forward_losses.1']
  #allocation3 [shape = 'u8[512]{0}', space=smem, size = 0x200, scoped, tag = 'prefetched SMEM operand 0']
  %s0 = inlined_call_operand.vmem [shape: s32[2], index: 0, kind: input, shape index: {}]
  %s1 = inlined_call_operand.vmem [shape: f32[2,8,256], index: 1, kind: input, shape index: {}]
  %s2 = inlined_call_operand.vmem [shape: s32[2,1,256], index: 2, kind: input, shape index: {}]
  %s3 = inlined_call_operand.vmem [shape: f32[2,2,256], index: 3, kind: input, shape index: {}]
  %s4 = inlined_call_operand.vmem [shape: f32[2,8,128], index: 4, kind: input, shape index: {}]
  %s5 = inlined_call_operand.vmem [shape: s32[2,1,128], index: 5, kind: input, shape index: {}]
  %s6 = inlined_call_operand.vmem [shape: f32[2,8,128], index: 6, kind: input, shape index: {}]
  %s7 = inlined_call_operand.vmem [shape: f32[2,8,128], index: 7, kind: output, shape index: {}]
  %s8 = sld [smem:[#allocation0]]
  $region65: #{_fused_forward_losses.1} parent=0
    _
  %s10 = ssub.s32 1, %s8
  %s11 = scalar_select 0, %s10, %s8
  %s13 = sshll.u32 %s0, 4
  %s14 = int_to_ptr.vmem [resolvable:$true] %s13
  %16 = dma.vmem_to_smem %s14, 16, [#allocation3], [#allocation2]
  %18 = dma.done [#allocation2], 16
  %19 = sfence
  loop: start=0, step=1, limit=4
  $region2: #{_fused_forward_losses.1} parent=0 // loop_pre_header
    _
  $region3: #{_fused_forward_losses.1} parent=0 // loop_header
    %s21 = sphi 0, %s25
    %p22 = scmp.ge.s32.totalorder %s21, 4
    %s31 = sphi 0, %s33
    %s34 = sphi 0, %s31
    %s35 = sphi 0, %s34
    %s51 = sphi 0, %s35
    %s57 = sphi 0, %s59
    %s60 = sphi 0, %s57
    %s61 = sphi 0, %s60
    %s77 = sphi 0, %s61
    %s83 = sphi 0, %s85
    %s86 = sphi 0, %s83
    %s87 = sphi 0, %s86
    %s103 = sphi 0, %s87
    %s109 = sphi 0, %s111
    %s112 = sphi 0, %s109
    %s113 = sphi 0, %s112
    %s129 = sphi 0, %s113
    %s135 = sphi 0, %s137
    %s138 = sphi 0, %s135
    %s139 = sphi 0, %s138
    %s155 = sphi 0, %s139
    %s161 = sphi 0, %s163
    %s164 = sphi 0, %s161
    %s165 = sphi 0, %s164
    %s181 = sphi 0, %s165
    %s187 = sphi 0, %s189
    %s190 = sphi 0, %s187
    %s191 = sphi 0, %s190
    %s207 = sphi 0, %s191
  $region4: #{_fused_forward_losses.1} parent=0 // loop_header_branch
    %24 = sbr.rel (%p22) target = $region8
  $region5: #{_fused_forward_losses.1} parent=0 // loop_body
    %s26 = ssub.s32 %s21, 1
    %s27 = ssub.s32 %s21, 2
    %s28 = sadd.s32 %s21, 1
    %s29 = ssub.s32 %s21, %s28
    %p30 = scmp.eq.s32.totalorder %s29, 0
    %s32 = sadd.s32 %s31, 1
    %s33 = scalar_select %p30, %s31, %s32
    %p36 = pneg %p30
    %p37 = scmp.eq.s32.totalorder %s21, 1
    %p38 = por %p36, %p37
    %p39 = scmp.ne.s32.totalorder %s31, %s34
    %p40 = scmp.eq.s32.totalorder %s21, 0
    %p41 = por %p39, %p40
    %p42 = scmp.ne.s32.totalorder %s31, %s34
    %p43 = scmp.eq.s32.totalorder %s26, 1
    %p44 = por %p42, %p43
    %p45 = scmp.ne.s32.totalorder %s34, %s35
    %p46 = scmp.eq.s32.totalorder %s26, 0
    %p47 = por %p45, %p46
    %p48 = scmp.ne.s32.totalorder %s34, %s35
    %p49 = scmp.eq.s32.totalorder %s27, 1
    %p50 = por %p48, %p49
    %p52 = scmp.ne.s32.totalorder %s35, %s51
    %p53 = scmp.eq.s32.totalorder %s27, 0
    %p54 = por %p52, %p53
    %s55 = ssub.s32 %s21, %s28
    %p56 = scmp.eq.s32.totalorder %s55, 0
    %s58 = sadd.s32 %s57, 1
    %s59 = scalar_select %p56, %s57, %s58
    %p62 = pneg %p56
    %p63 = scmp.eq.s32.totalorder %s21, 1
    %p64 = por %p62, %p63
    %p65 = scmp.ne.s32.totalorder %s57, %s60
    %p66 = scmp.eq.s32.totalorder %s21, 0
    %p67 = por %p65, %p66
    %p68 = scmp.ne.s32.totalorder %s57, %s60
    %p69 = scmp.eq.s32.totalorder %s26, 1
    %p70 = por %p68, %p69
    %p71 = scmp.ne.s32.totalorder %s60, %s61
    %p72 = scmp.eq.s32.totalorder %s26, 0
    %p73 = por %p71, %p72
    %p74 = scmp.ne.s32.totalorder %s60, %s61
    %p75 = scmp.eq.s32.totalorder %s27, 1
    %p76 = por %p74, %p75
    %p78 = scmp.ne.s32.totalorder %s61, %s77
    %p79 = scmp.eq.s32.totalorder %s27, 0
    %p80 = por %p78, %p79
    %s81 = ssub.s32 %s21, %s28
    %p82 = scmp.eq.s32.totalorder %s81, 0
    %s84 = sadd.s32 %s83, 1
    %s85 = scalar_select %p82, %s83, %s84
    %p88 = pneg %p82
    %p89 = scmp.eq.s32.totalorder %s21, 1
    %p90 = por %p88, %p89
    %p91 = scmp.ne.s32.totalorder %s83, %s86
    %p92 = scmp.eq.s32.totalorder %s21, 0
    %p93 = por %p91, %p92
    %p94 = scmp.ne.s32.totalorder %s83, %s86
    %p95 = scmp.eq.s32.totalorder %s26, 1
    %p96 = por %p94, %p95
    %p97 = scmp.ne.s32.totalorder %s86, %s87
    %p98 = scmp.eq.s32.totalorder %s26, 0
    %p99 = por %p97, %p98
    %p100 = scmp.ne.s32.totalorder %s86, %s87
    %p101 = scmp.eq.s32.totalorder %s27, 1
    %p102 = por %p100, %p101
    %p104 = scmp.ne.s32.totalorder %s87, %s103
    %p105 = scmp.eq.s32.totalorder %s27, 0
    %p106 = por %p104, %p105
    %s107 = ssub.s32 %s21, %s28
    %p108 = scmp.eq.s32.totalorder %s107, 0
    %s110 = sadd.s32 %s109, 1
    %s111 = scalar_select %p108, %s109, %s110
    %p114 = pneg %p108
    %p115 = scmp.eq.s32.totalorder %s21, 1
    %p116 = por %p114, %p115
    %p117 = scmp.ne.s32.totalorder %s109, %s112
    %p118 = scmp.eq.s32.totalorder %s21, 0
    %p119 = por %p117, %p118
    %p120 = scmp.ne.s32.totalorder %s109, %s112
    %p121 = scmp.eq.s32.totalorder %s26, 1
    %p122 = por %p120, %p121
    %p123 = scmp.ne.s32.totalorder %s112, %s113
    %p124 = scmp.eq.s32.totalorder %s26, 0
    %p125 = por %p123, %p124
    %p126 = scmp.ne.s32.totalorder %s112, %s113
    %p127 = scmp.eq.s32.totalorder %s27, 1
    %p128 = por %p126, %p127
    %p130 = scmp.ne.s32.totalorder %s113, %s129
    %p131 = scmp.eq.s32.totalorder %s27, 0
    %p132 = por %p130, %p131
    %s133 = ssub.s32 %s21, %s28
    %p134 = scmp.eq.s32.totalorder %s133, 0
    %s136 = sadd.s32 %s135, 1
    %s137 = scalar_select %p134, %s135, %s136
    %p140 = pneg %p134
    %p141 = scmp.eq.s32.totalorder %s21, 1
    %p142 = por %p140, %p141
    %p143 = scmp.ne.s32.totalorder %s135, %s138
    %p144 = scmp.eq.s32.totalorder %s21, 0
    %p145 = por %p143, %p144
    %p146 = scmp.ne.s32.totalorder %s135, %s138
    %p147 = scmp.eq.s32.totalorder %s26, 1
    %p148 = por %p146, %p147
    %p149 = scmp.ne.s32.totalorder %s138, %s139
    %p150 = scmp.eq.s32.totalorder %s26, 0
    %p151 = por %p149, %p150
    %p152 = scmp.ne.s32.totalorder %s138, %s139
    %p153 = scmp.eq.s32.totalorder %s27, 1
    %p154 = por %p152, %p153
    %p156 = scmp.ne.s32.totalorder %s139, %s155
    %p157 = scmp.eq.s32.totalorder %s27, 0
    %p158 = por %p156, %p157
    %s159 = ssub.s32 %s21, %s28
    %p160 = scmp.eq.s32.totalorder %s159, 0
    %s162 = sadd.s32 %s161, 1
    %s163 = scalar_select %p160, %s161, %s162
    %p166 = pneg %p160
    %p167 = scmp.eq.s32.totalorder %s21, 1
    %p168 = por %p166, %p167
    %p169 = scmp.ne.s32.totalorder %s161, %s164
    %p170 = scmp.eq.s32.totalorder %s21, 0
    %p171 = por %p169, %p170
    %p172 = scmp.ne.s32.totalorder %s161, %s164
    %p173 = scmp.eq.s32.totalorder %s26, 1
    %p174 = por %p172, %p173
    %p175 = scmp.ne.s32.totalorder %s164, %s165
    %p176 = scmp.eq.s32.totalorder %s26, 0
    %p177 = por %p175, %p176
    %p178 = scmp.ne.s32.totalorder %s164, %s165
    %p179 = scmp.eq.s32.totalorder %s27, 1
    %p180 = por %p178, %p179
    %p182 = scmp.ne.s32.totalorder %s165, %s181
    %p183 = scmp.eq.s32.totalorder %s27, 0
    %p184 = por %p182, %p183
    %s185 = ssub.s32 %s21, %s28
    %p186 = scmp.eq.s32.totalorder %s185, 0
    %s188 = sadd.s32 %s187, 1
    %s189 = scalar_select %p186, %s187, %s188
    %p192 = pneg %p186
    %p193 = scmp.eq.s32.totalorder %s21, 1
    %p194 = por %p192, %p193
    %p195 = scmp.ne.s32.totalorder %s187, %s190
    %p196 = scmp.eq.s32.totalorder %s21, 0
    %p197 = por %p195, %p196
    %p198 = scmp.ne.s32.totalorder %s187, %s190
    %p199 = scmp.eq.s32.totalorder %s26, 1
    %p200 = por %p198, %p199
    %p201 = scmp.ne.s32.totalorder %s190, %s191
    %p202 = scmp.eq.s32.totalorder %s26, 0
    %p203 = por %p201, %p202
    %p204 = scmp.ne.s32.totalorder %s190, %s191
    %p205 = scmp.eq.s32.totalorder %s27, 1
    %p206 = por %p204, %p205
    %p208 = scmp.ne.s32.totalorder %s191, %s207
    %p209 = scmp.eq.s32.totalorder %s27, 0
    %p210 = por %p208, %p209
    %p211 = scmp.le.s32.totalorder 1, %s21
    %p212 = scmp.lt.s32.totalorder %s21, 3
    %p213 = pnand %p211, %p212
    %p214 = pneg %p213
    // Predicated region
    $region9: #{_fused_forward_losses.1} parent=5 // pred_check
      _
    $region10: #{_fused_forward_losses.1} parent=5 // pred_check_branch
      %216 = sbr.rel (%p213) target = $region12
    $region11: #{_fused_forward_losses.1} parent=5 // pred_region
      %s217 = ssub.s32 %s21, 1
    $region12: #{_fused_forward_losses.1} parent=5 // pred_fallthru
      _
    %p218 = scmp.lt.s32.totalorder %s21, 2
    // Predicated region
    $region13: #{_fused_forward_losses.1} parent=5 // pred_check
      %p219 = pneg %p218
    $region14: #{_fused_forward_losses.1} parent=5 // pred_check_branch
      %221 = sbr.rel (%p219) target = $region16
    $region15: #{_fused_forward_losses.1} parent=5 // pred_region
      // Predicated region
      $region17: #{_fused_forward_losses.1} parent=15 // pred_check
        %p222 = pneg %p41
      $region18: #{_fused_forward_losses.1} parent=15 // pred_check_branch
        %224 = sbr.rel (%p222) target = $region20
      $region19: #{_fused_forward_losses.1} parent=15 // pred_region
        %p225 = scmp.lt.s32.totalorder %s21, 1
        %s226 = scalar_select %p225, %s21, 1
        %s227 = smul.addr %s226, 2
        %s228 = smul.addr %s227, 8
        %s229 = scalar_lea.vmem %s1, %s228
      $region20: #{_fused_forward_losses.1} parent=15 // pred_fallthru
        _
      // Predicated region
      $region21: #{_fused_forward_losses.1} parent=15 // pred_check
        %p230 = pneg %p67
      $region22: #{_fused_forward_losses.1} parent=15 // pred_check_branch
        %232 = sbr.rel (%p230) target = $region24
      $region23: #{_fused_forward_losses.1} parent=15 // pred_region
        %p233 = scmp.lt.s32.totalorder %s21, 1
        %s234 = scalar_select %p233, %s21, 1
        %s235 = smul.addr %s234, 2
        %s236 = scalar_lea.vmem %s2, %s235
      $region24: #{_fused_forward_losses.1} parent=15 // pred_fallthru
        _
      // Predicated region
      $region25: #{_fused_forward_losses.1} parent=15 // pred_check
        %p237 = pneg %p93
      $region26: #{_fused_forward_losses.1} parent=15 // pred_check_branch
        %239 = sbr.rel (%p237) target = $region28
      $region27: #{_fused_forward_losses.1} parent=15 // pred_region
        %p240 = scmp.lt.s32.totalorder %s21, 1
        %s241 = scalar_select %p240, %s21, 1
        %s242 = smul.addr %s241, 2
        %s243 = smul.addr %s242, 2
        %s244 = scalar_lea.vmem %s3, %s243
      $region28: #{_fused_forward_losses.1} parent=15 // pred_fallthru
        _
      // Predicated region
      $region29: #{_fused_forward_losses.1} parent=15 // pred_check
        %p245 = pneg %p119
      $region30: #{_fused_forward_losses.1} parent=15 // pred_check_branch
        %247 = sbr.rel (%p245) target = $region32
      $region31: #{_fused_forward_losses.1} parent=15 // pred_region
        %p248 = scmp.lt.s32.totalorder %s21, 1
        %s249 = scalar_select %p248, %s21, 1
        %s250 = smul.addr %s249, 8
        %s251 = scalar_lea.vmem %s4, %s250
      $region32: #{_fused_forward_losses.1} parent=15 // pred_fallthru
        _
      // Predicated region
      $region33: #{_fused_forward_losses.1} parent=15 // pred_check
        %p252 = pneg %p145
      $region34: #{_fused_forward_losses.1} parent=15 // pred_check_branch
        %254 = sbr.rel (%p252) target = $region36
      $region35: #{_fused_forward_losses.1} parent=15 // pred_region
        %p255 = scmp.lt.s32.totalorder %s21, 1
        %s256 = scalar_select %p255, %s21, 1
        %s257 = scalar_lea.vmem %s5, %s256
      $region36: #{_fused_forward_losses.1} parent=15 // pred_fallthru
        _
      // Predicated region
      $region37: #{_fused_forward_losses.1} parent=15 // pred_check
        %p258 = pneg %p171
      $region38: #{_fused_forward_losses.1} parent=15 // pred_check_branch
        %260 = sbr.rel (%p258) target = $region40
      $region39: #{_fused_forward_losses.1} parent=15 // pred_region
        %p261 = scmp.lt.s32.totalorder %s21, 1
        %s262 = scalar_select %p261, %s21, 1
        %s263 = smul.addr %s262, 8
        %s264 = scalar_lea.vmem %s6, %s263
      $region40: #{_fused_forward_losses.1} parent=15 // pred_fallthru
        _
    $region16: #{_fused_forward_losses.1} parent=5 // pred_fallthru
      _
    %p265 = scmp.le.s32.totalorder 1, %s21
    %p266 = scmp.lt.s32.totalorder %s21, 3
    %p267 = pnand %p265, %p266
    %p268 = pneg %p267
    // Predicated region
    $region41: #{_fused_forward_losses.1} parent=5 // pred_check
      _
    $region42: #{_fused_forward_losses.1} parent=5 // pred_check_branch
      %270 = sbr.rel (%p267) target = $region44
    $region43: #{_fused_forward_losses.1} parent=5 // pred_region
      %s271 = ssub.s32 %s21, 1
      %p272 = scmp.lt.s32.totalorder %s26, 1
      %s273 = scalar_select %p272, %s26, 1
      %s274 = smul.addr %s273, 2
      %s275 = smul.addr %s274, 8
      %s276 = scalar_lea.vmem %s1, %s275
      %p277 = pneg %p47
      %p278 = pneg %p44
      %p279 = scmp.lt.s32.totalorder %s26, 1
      %s280 = scalar_select %p279, %s26, 1
      %s281 = smul.addr %s280, 2
      %s282 = scalar_lea.vmem %s2, %s281
      %p283 = pneg %p73
      %p284 = pneg %p70
      %p285 = scmp.lt.s32.totalorder %s26, 1
      %s286 = scalar_select %p285, %s26, 1
      %s287 = smul.addr %s286, 2
      %s288 = smul.addr %s287, 2
      %s289 = scalar_lea.vmem %s3, %s288
      %p290 = pneg %p99
      %p291 = pneg %p96
      %p292 = scmp.lt.s32.totalorder %s26, 1
      %s293 = scalar_select %p292, %s26, 1
      %s294 = smul.addr %s293, 8
      %s295 = scalar_lea.vmem %s4, %s294
      %p296 = pneg %p125
      %p297 = pneg %p122
      %p298 = scmp.lt.s32.totalorder %s26, 1
      %s299 = scalar_select %p298, %s26, 1
      %s300 = scalar_lea.vmem %s5, %s299
      %p301 = pneg %p151
      %p302 = pneg %p148
      %p303 = scmp.lt.s32.totalorder %s26, 1
      %s304 = scalar_select %p303, %s26, 1
      %s305 = smul.addr %s304, 8
      %s306 = scalar_lea.vmem %s6, %s305
      %p307 = pneg %p177
      %p308 = pneg %p174
      %p309 = pneg %p203
      %p310 = pneg %p200
      %p311 = scmp.lt.s32.totalorder %s26, 1
      %s312 = scalar_select %p311, %s26, 1
      %s313 = smul.addr %s312, 8
      %s314 = scalar_lea.vmem %s7, %s313
      %p315 = scmp.lt.s32.totalorder %s26, 1
      %s316 = scalar_select %p315, %s26, 1
      %s317 = smul.addr %s316, 2
      %s318 = smul.addr %s317, 8
      %s319 = scalar_lea.vmem %s1, %s318
      %p320 = scmp.lt.s32.totalorder %s26, 1
      %s321 = scalar_select %p320, %s26, 1
      %s322 = smul.addr %s321, 2
      %s323 = scalar_lea.vmem %s2, %s322
      %p324 = scmp.lt.s32.totalorder %s26, 1
      %s325 = scalar_select %p324, %s26, 1
      %s326 = smul.addr %s325, 2
      %s327 = smul.addr %s326, 2
      %s328 = scalar_lea.vmem %s3, %s327
      %p329 = scmp.lt.s32.totalorder %s26, 1
      %s330 = scalar_select %p329, %s26, 1
      %s331 = smul.addr %s330, 8
      %s332 = scalar_lea.vmem %s4, %s331
      %p333 = scmp.lt.s32.totalorder %s26, 1
      %s334 = scalar_select %p333, %s26, 1
      %s335 = scalar_lea.vmem %s5, %s334
      %p336 = scmp.lt.s32.totalorder %s26, 1
      %s337 = scalar_select %p336, %s26, 1
      %s338 = smul.addr %s337, 8
      %s339 = scalar_lea.vmem %s6, %s338
      %p340 = scmp.lt.s32.totalorder %s26, 1
      %s341 = scalar_select %p340, %s26, 1
      %s342 = smul.addr %s341, 8
      %s343 = scalar_lea.vmem %s7, %s342
      %s344 = sld [smem:[#allocation3 + %s26]]
      %p345 = scmp.ne.s32.totalorder %s344, 0
      // Predicated region
      $region45: #{_fused_forward_losses.1} parent=43 // pred_check
        %p346 = pneg %p345
      $region46: #{_fused_forward_losses.1} parent=43 // pred_check_branch
        %348 = sbr.rel (%p346) target = $region48
      $region47: #{_fused_forward_losses.1} parent=43 // pred_region
        %v349 = vld [vmem:[%s319] sm:$0xff]
        %v350 = vld [vmem:[%s319 + $0x8] sm:$0xff]
        %v351 = vld [vmem:[%s323] sm:$0x3]
        %v354 = vrot.slane %v349, 2
        %v355 = vrot.slane %v350, 2
        %v358 = vmin.f32 %v349, %v354
        %v359 = vmin.f32 %v350, %v355
        %v360 = vmax.f32 %v349, %v354
        %v361 = vmax.f32 %v350, %v355
        %v362 = vsub.f32 %v360, %v358
        %v363 = vsub.f32 %v361, %v359
        %v366 = vrot.slane %v362, 1
        %v367 = vrot.slane %v363, 1
        %v370 = vmul.f32 %v362, %v366
        %v371 = vmul.f32 %v363, %v367
        %v372 = vand.u32 2147483647, %v370
        %v373 = vand.u32 2147483647, %v371
        %v376 = vrot.slane %v360, 4
        %v377 = vrot.slane %v361, 4
        %v380 = vmin.f32 %v360, %v376
        %v381 = vmin.f32 %v361, %v377
        %v384 = vrot.slane %v358, 4
        %v385 = vrot.slane %v359, 4
        %v388 = vmax.f32 %v358, %v384
        %v389 = vmax.f32 %v359, %v385
        %v390 = vsub.f32 %v380, %v388
        %v391 = vsub.f32 %v381, %v389
        %v392 = vmax.f32 %v390, 0.0
        %v393 = vmax.f32 %v391, 0.0
        %v396 = vrot.slane %v392, 7
        %v397 = vrot.slane %v393, 7
        %v400 = vmul.f32 %v392, %v396
        %v401 = vmul.f32 %v393, %v397
        %v402 = vmax.f32 %v360, %v376
        %v403 = vmax.f32 %v361, %v377
        %v404 = vmin.f32 %v358, %v384
        %v405 = vmin.f32 %v359, %v385
        %v406 = vsub.f32 %v402, %v404
        %v407 = vsub.f32 %v403, %v405
        %v410 = vrot.slane %v406, 1
        %v411 = vrot.slane %v407, 1
        %v414 = vmul.f32 %v406, %v410
        %v415 = vmul.f32 %v407, %v411
        %v418 = vrot.slane %v372, 4
        %v419 = vrot.slane %v373, 4
        %v422 = vadd.f32 %v372, %v418
        %v423 = vadd.f32 %v373, %v419
        %v426 = vrot.slane %v400, 1
        %v427 = vrot.slane %v401, 1
        %v430 = vsub.f32 %v422, %v426
        %v431 = vsub.f32 %v423, %v427
        %v432 = vadd.f32 %v430, 1e-07
        %v433 = vadd.f32 %v431, 1e-07
        %v434 = vrcp.pop %v432
        %v435 = vrcp.pop %v433
        %v436 = vadd.f32 %v414, 1e-07
        %v437 = vadd.f32 %v415, 1e-07
        %v438 = vrcp.pop %v436
        %v439 = vrcp.pop %v437
        %v442 = vrot.slane %v434, 7
        %v443 = vrot.slane %v435, 7
        %v446 = vmul.f32 %v400, %v442
        %v447 = vmul.f32 %v401, %v443
        %v448 = vsub.f32 %v414, %v430
        %v449 = vsub.f32 %v415, %v431
        %v450 = vmul.f32 %v448, %v438
        %v451 = vmul.f32 %v449, %v439
        %v454 = vrot.slane %v450, 7
        %v455 = vrot.slane %v451, 7
        %v458 = vsub.f32 %v446, %v454
        %v459 = vsub.f32 %v447, %v455
        %v460 = vsub.f32 1.0, %v458
        %v461 = vsub.f32 1.0, %v459
        %vm462 = vcmp.gt.s32.totalorder %v351, 0
        %465 = vst [vmem:[#allocation1] sm:$0xff] %v460
        %466 = vst [vmem:[#allocation1 + $0x9] sm:$0xff] %v461
        %s467 = scalar_lea.vmem [#allocation1], 1
        %v468 = vld [vmem:[%s467] ss:$9 sm:$0xff]
        %v470 = vsel %vm462, %v468, 0.0
        %v472 = vperm.slane %v470, 0
        %v473 = vperm.slane %v470, 1
        %vm476 = vcmask 1040384
        %v477 = vsel %vm476, %v472, 0.0
        %v478 = vsel %vm476, %v473, 0.0
        %v479 = vadd.f32 %v477, %v478
        %480 = vadd.xlane.f32.xlu0 %v479
        %v481 = vpop.xlane.xlu0 %480
        %v482 = vrot.slane %v481, 4
        %v483 = vadd.f32 %v481, %v482
        %v484 = vrot.slane %v483, 2
        %v485 = vadd.f32 %v483, %v484
        %v486 = vrot.slane %v485, 1
        %v487 = vadd.f32 %v485, %v486
        %s488 = vtos %v487
        %v489 = vstv %s488
        %v490 = vsel %vm462, 1.0, 0.0
        %v492 = vperm.slane %v490, 0
        %v493 = vperm.slane %v490, 1
        %v496 = vsel %vm476, %v492, 0.0
        %v497 = vsel %vm476, %v493, 0.0
        %v498 = vadd.f32 %v496, %v497
        %499 = vadd.xlane.f32.xlu0 %v498
        %v500 = vpop.xlane.xlu0 %499
        %v501 = vrot.slane %v500, 4
        %v502 = vadd.f32 %v500, %v501
        %v503 = vrot.slane %v502, 2
        %v504 = vadd.f32 %v502, %v503
        %v505 = vrot.slane %v504, 1
        %v506 = vadd.f32 %v504, %v505
        %s507 = vtos %v506
        %v508 = vstv %s507
        %v509 = vmax.f32 %v508, 1.0
        %v510 = vrcp.pop %v509
        %v511 = vmul.f32 %v489, %v510
        %v512 = vld [vmem:[%s328] sm:$0xf]
        %514 = vst [vmem:[#allocation1] ss:$4 sm:$0xff] %v512
        %v515 = vld.sshfl [vmem:[#allocation1] sm:$0xff pattern:$0x73625140]
        %v516 = vld.sshfl [vmem:[#allocation1 + $0x8] sm:$0xff pattern:$0x73625140]
        %vm519 = vcmask 1041408
        %v520 = vsel %vm519, %v515, -inf
        %v521 = vrot.slane %v520, 4
        %v522 = vmax.f32 %v520, %v521
        %v523 = vrot.slane %v522, 2
        %v524 = vmax.f32 %v522, %v523
        %v525 = vrot.slane %v524, 1
        %v526 = vmax.f32 %v524, %v525
        %v527 = vsel %vm519, %v516, -inf
        %v528 = vrot.slane %v527, 4
        %v529 = vmax.f32 %v527, %v528
        %v530 = vrot.slane %v529, 2
        %v531 = vmax.f32 %v529, %v530
        %v532 = vrot.slane %v531, 1
        %v533 = vmax.f32 %v531, %v532
        %v536 = vrot.slane %v533, 6
        %v537 = vsel %vm519, %v526, %v536
        %v539 = vsub.f32 %v512, %v537
        %v540 = vmul.f32 %v539, 1.442695
        %v541 = vpow.pop %v540
        %543 = vst [vmem:[#allocation1] ss:$4 sm:$0xff] %v541
        %v544 = vld.sshfl [vmem:[#allocation1] sm:$0xff pattern:$0x73625140]
        %v545 = vld.sshfl [vmem:[#allocation1 + $0x8] sm:$0xff pattern:$0x73625140]
        %v548 = vsel %vm519, %v544, 0.0
        %v549 = vrot.slane %v548, 4
        %v550 = vadd.f32 %v548, %v549
        %v551 = vrot.slane %v550, 2
        %v552 = vadd.f32 %v550, %v551
        %v553 = vrot.slane %v552, 1
        %v554 = vadd.f32 %v552, %v553
        %v555 = vsel %vm519, %v545, 0.0
        %v556 = vrot.slane %v555, 4
        %v557 = vadd.f32 %v555, %v556
        %v558 = vrot.slane %v557, 2
        %v559 = vadd.f32 %v557, %v558
        %v560 = vrot.slane %v559, 1
        %v561 = vadd.f32 %v559, %v560
        %v562 = vlog2.pop %v554
        %v563 = vmul.f32 %v562, 0.6931472
        %v564 = vlog2.pop %v561
        %v565 = vmul.f32 %v564, 0.6931472
        %v566 = vadd.f32 %v526, %v563
        %v567 = vadd.f32 %v533, %v565
        %v568 = vlaneseq
        %v569 = vshrl.u32 %v568, 7
        %v570 = vperm.slane %v351, 0
        %v571 = vperm.slane %v351, 1
        %vm572 = vcmp.eq.s32.totalorder %v569, %v570
        %vm573 = vcmp.eq.s32.totalorder %v569, %v571
        %574 = vst [vmem:[#allocation1] ss:$4 sm:$0xff] %v512
        %v575 = vld.sshfl [vmem:[#allocation1] sm:$0xff pattern:$0x73625140]
        %v576 = vld.sshfl [vmem:[#allocation1 + $0x8] sm:$0xff pattern:$0x73625140]
        %v579 = vsel %vm572, %v575, 0.0
        %v580 = vsel %vm573, %v576, 0.0
        %v581 = vsel %vm519, %v579, 0.0
        %v582 = vrot.slane %v581, 4
        %v583 = vadd.f32 %v581, %v582
        %v584 = vrot.slane %v583, 2
        %v585 = vadd.f32 %v583, %v584
        %v586 = vrot.slane %v585, 1
        %v587 = vadd.f32 %v585, %v586
        %v588 = vsel %vm519, %v580, 0.0
        %v589 = vrot.slane %v588, 4
        %v590 = vadd.f32 %v588, %v589
        %v591 = vrot.slane %v590, 2
        %v592 = vadd.f32 %v590, %v591
        %v593 = vrot.slane %v592, 1
        %v594 = vadd.f32 %v592, %v593
        %v595 = vsub.f32 %v566, %v587
        %v596 = vsub.f32 %v567, %v594
        %vm597 = vcmp.ne.s32.totalorder %v351, 4294967295
        %v600 = vrot.slane %v596, 7
        %v601 = vsel %vm476, %v595, %v600
        %v603 = vsel %vm597, %v601, 0.0
        %v605 = vperm.slane %v603, 0
        %v606 = vperm.slane %v603, 1
        %v609 = vsel %vm476, %v605, 0.0
        %v610 = vsel %vm476, %v606, 0.0
        %v611 = vadd.f32 %v609, %v610
        %612 = vadd.xlane.f32.xlu0 %v611
        %v613 = vpop.xlane.xlu0 %612
        %v614 = vrot.slane %v613, 4
        %v615 = vadd.f32 %v613, %v614
        %v616 = vrot.slane %v615, 2
        %v617 = vadd.f32 %v615, %v616
        %v618 = vrot.slane %v617, 1
        %v619 = vadd.f32 %v617, %v618
        %s620 = vtos %v619
        %v621 = vstv %s620
        %v622 = vsel %vm597, 1.0, 0.0
        %v624 = vperm.slane %v622, 0
        %v625 = vperm.slane %v622, 1
        %v628 = vsel %vm476, %v624, 0.0
        %v629 = vsel %vm476, %v625, 0.0
        %v630 = vadd.f32 %v628, %v629
        %631 = vadd.xlane.f32.xlu0 %v630
        %v632 = vpop.xlane.xlu0 %631
        %v633 = vrot.slane %v632, 4
        %v634 = vadd.f32 %v632, %v633
        %v635 = vrot.slane %v634, 2
        %v636 = vadd.f32 %v634, %v635
        %v637 = vrot.slane %v636, 1
        %v638 = vadd.f32 %v636, %v637
        %s639 = vtos %v638
        %v640 = vstv %s639
        %v641 = vmax.f32 %v640, 1.0
        %v642 = vrcp.pop %v641
        %v643 = vmul.f32 %v621, %v642
        %v644 = vld [vmem:[%s332] sm:$0xff]
        %v645 = vld [vmem:[%s335] sm:$0x1]
        %v647 = vrot.slane %v644, 2
        %v649 = vmin.f32 %v644, %v647
        %v650 = vmax.f32 %v644, %v647
        %v651 = vsub.f32 %v650, %v649
        %v653 = vrot.slane %v651, 1
        %v655 = vmul.f32 %v651, %v653
        %v656 = vand.u32 2147483647, %v655
        %v658 = vrot.slane %v650, 4
        %v660 = vmin.f32 %v650, %v658
        %v662 = vrot.slane %v649, 4
        %v664 = vmax.f32 %v649, %v662
        %v665 = vsub.f32 %v660, %v664
        %v666 = vmax.f32 %v665, 0.0
        %v668 = vrot.slane %v666, 7
        %v670 = vmul.f32 %v666, %v668
        %v671 = vmax.f32 %v650, %v658
        %v672 = vmin.f32 %v649, %v662
        %v673 = vsub.f32 %v671, %v672
        %v675 = vrot.slane %v673, 1
        %v677 = vmul.f32 %v673, %v675
        %v679 = vrot.slane %v656, 4
        %v681 = vadd.f32 %v656, %v679
        %v683 = vrot.slane %v670, 1
        %v685 = vsub.f32 %v681, %v683
        %v686 = vadd.f32 %v685, 1e-07
        %v687 = vrcp.pop %v686
        %v688 = vadd.f32 %v677, 1e-07
        %v689 = vrcp.pop %v688
        %v691 = vrot.slane %v687, 7
        %v693 = vmul.f32 %v670, %v691
        %v694 = vsub.f32 %v677, %v685
        %v695 = vmul.f32 %v694, %v689
        %v697 = vrot.slane %v695, 7
        %v699 = vsub.f32 %v693, %v697
        %v700 = vsub.f32 1.0, %v699
        %vm701 = vcmp.gt.s32.totalorder %v645, 0
        %703 = vst [vmem:[#allocation1] sm:$0xff] %v700
        %s704 = scalar_lea.vmem [#allocation1], 1
        %v705 = vld [vmem:[%s704] ss:$9 sm:$0xff]
        %v707 = vsel %vm701, %v705, 0.0
        %v708 = vsel %vm476, %v707, 0.0
        %709 = vadd.xlane.f32.xlu0 %v708
        %v710 = vpop.xlane.xlu0 %709
        %v711 = vrot.slane %v710, 4
        %v712 = vadd.f32 %v710, %v711
        %v713 = vrot.slane %v712, 2
        %v714 = vadd.f32 %v712, %v713
        %v715 = vrot.slane %v714, 1
        %v716 = vadd.f32 %v714, %v715
        %s717 = vtos %v716
        %v718 = vstv %s717
        %v719 = vsel %vm701, 1.0, 0.0
        %v720 = vsel %vm476, %v719, 0.0
        %721 = vadd.xlane.f32.xlu0 %v720
        %v722 = vpop.xlane.xlu0 %721
        %v723 = vrot.slane %v722, 4
        %v724 = vadd.f32 %v722, %v723
        %v725 = vrot.slane %v724, 2
        %v726 = vadd.f32 %v724, %v725
        %v727 = vrot.slane %v726, 1
        %v728 = vadd.f32 %v726, %v727
        %s729 = vtos %v728
        %v730 = vstv %s729
        %v731 = vmax.f32 %v730, 1.0
        %v732 = vrcp.pop %v731
        %v733 = vmul.f32 %v718, %v732
        %v734 = vld [vmem:[%s339] sm:$0xff]
        %v735 = vrot.slane %v734, 4
        %v736 = vmax.f32 %v734, %v735
        %v737 = vrot.slane %v736, 2
        %v738 = vmax.f32 %v736, %v737
        %v739 = vrot.slane %v738, 1
        %v740 = vmax.f32 %v738, %v739
        %v741 = vsub.f32 %v734, %v740
        %v742 = vmul.f32 %v741, 1.442695
        %v743 = vpow.pop %v742
        %v744 = vrot.slane %v743, 4
        %v745 = vadd.f32 %v743, %v744
        %v746 = vrot.slane %v745, 2
        %v747 = vadd.f32 %v745, %v746
        %v748 = vrot.slane %v747, 1
        %v749 = vadd.f32 %v747, %v748
        %v750 = vlog2.pop %v749
        %v751 = vmul.f32 %v750, 0.6931472
        %v752 = vadd.f32 %v740, %v751
        %v753 = vperm.slane %v645, 0
        %vm754 = vcmp.eq.s32.totalorder %v569, %v753
        %v755 = vsel %vm754, %v734, 0.0
        %v756 = vrot.slane %v755, 4
        %v757 = vadd.f32 %v755, %v756
        %v758 = vrot.slane %v757, 2
        %v759 = vadd.f32 %v757, %v758
        %v760 = vrot.slane %v759, 1
        %v761 = vadd.f32 %v759, %v760
        %v762 = vsub.f32 %v752, %v761
        %vm763 = vcmp.ne.s32.totalorder %v645, 4294967196
        %v764 = vsel %vm763, %v762, 0.0
        %v765 = vsel %vm476, %v764, 0.0
        %766 = vadd.xlane.f32.xlu0 %v765
        %v767 = vpop.xlane.xlu0 %766
        %v768 = vrot.slane %v767, 4
        %v769 = vadd.f32 %v767, %v768
        %v770 = vrot.slane %v769, 2
        %v771 = vadd.f32 %v769, %v770
        %v772 = vrot.slane %v771, 1
        %v773 = vadd.f32 %v771, %v772
        %s774 = vtos %v773
        %v775 = vstv %s774
        %v776 = vsel %vm763, 1.0, 0.0
        %v777 = vsel %vm476, %v776, 0.0
        %778 = vadd.xlane.f32.xlu0 %v777
        %v779 = vpop.xlane.xlu0 %778
        %v780 = vrot.slane %v779, 4
        %v781 = vadd.f32 %v779, %v780
        %v782 = vrot.slane %v781, 2
        %v783 = vadd.f32 %v781, %v782
        %v784 = vrot.slane %v783, 1
        %v785 = vadd.f32 %v783, %v784
        %s786 = vtos %v785
        %v787 = vstv %s786
        %v788 = vmax.f32 %v787, 1.0
        %v789 = vrcp.pop %v788
        %v790 = vmul.f32 %v775, %v789
        %vm791 = vcmp.eq.s32.totalorder %v569, 0
        %v792 = vsel %vm791, %v511, 0.0
        %vm793 = vcmp.eq.s32.totalorder %v569, 1
        %v794 = vsel %vm793, %v643, 0.0
        %v795 = vadd.f32 %v792, %v794
        %vm796 = vcmp.eq.s32.totalorder %v569, 2
        %v797 = vsel %vm796, %v733, 0.0
        %v798 = vadd.f32 %v795, %v797
        %vm799 = vcmp.eq.s32.totalorder %v569, 3
        %v800 = vsel %vm799, %v790, 0.0
        %v801 = vadd.f32 %v798, %v800
        %802 = vst [vmem:[%s343] sm:$0xff] %v801
      $region48: #{_fused_forward_losses.1} parent=43 // pred_fallthru
        _
      %s803 = sld [smem:[#allocation3 + %s26]]
      %p804 = scmp.eq.s32.totalorder %s803, 0
      // Predicated region
      $region49: #{_fused_forward_losses.1} parent=43 // pred_check
        %p805 = pneg %p804
      $region50: #{_fused_forward_losses.1} parent=43 // pred_check_branch
        %807 = sbr.rel (%p805) target = $region52
      $region51: #{_fused_forward_losses.1} parent=43 // pred_region
        %808 = vst [vmem:[%s343] sm:$0xff] 0.0
      $region52: #{_fused_forward_losses.1} parent=43 // pred_fallthru
        _
      %p809 = scmp.lt.s32.totalorder %s26, 1
      %s810 = scalar_select %p809, %s26, 1
      %s811 = smul.addr %s810, 8
      %s812 = scalar_lea.vmem %s7, %s811
      // Predicated region
      $region53: #{_fused_forward_losses.1} parent=43 // pred_check
        %p813 = pneg %p200
      $region54: #{_fused_forward_losses.1} parent=43 // pred_check_branch
        %815 = sbr.rel (%p813) target = $region56
      $region55: #{_fused_forward_losses.1} parent=43 // pred_region
        _
      $region56: #{_fused_forward_losses.1} parent=43 // pred_fallthru
        _
    $region44: #{_fused_forward_losses.1} parent=5 // pred_fallthru
      _
    %p816 = scmp.le.s32.totalorder 2, %s21
    // Predicated region
    $region57: #{_fused_forward_losses.1} parent=5 // pred_check
      %p817 = pneg %p816
    $region58: #{_fused_forward_losses.1} parent=5 // pred_check_branch
      %819 = sbr.rel (%p817) target = $region60
    $region59: #{_fused_forward_losses.1} parent=5 // pred_region
      %s820 = ssub.s32 %s21, 2
      // Predicated region
      $region61: #{_fused_forward_losses.1} parent=59 // pred_check
        %p821 = pneg %p206
      $region62: #{_fused_forward_losses.1} parent=59 // pred_check_branch
        %823 = sbr.rel (%p821) target = $region64
      $region63: #{_fused_forward_losses.1} parent=59 // pred_region
        %p824 = scmp.lt.s32.totalorder %s27, 1
        %s825 = scalar_select %p824, %s27, 1
        %s826 = smul.addr %s825, 8
        %s827 = scalar_lea.vmem %s7, %s826
      $region64: #{_fused_forward_losses.1} parent=59 // pred_fallthru
        _
    $region60: #{_fused_forward_losses.1} parent=5 // pred_fallthru
      _
  $region6: #{_fused_forward_losses.1} parent=0 // loop_footer
    %s25 = sadd.s32 1, %s21
  $region7: #{_fused_forward_losses.1} parent=0 // loop_footer_branch
    %20 = sbr.rel target = $region3
  $region8: #{_fused_forward_losses.1} parent=0 // loop_exit
    _

</llo_original>
